<compile_context>
chip_gen: v7x
topology: tpu7x:2x2x1
jax: 0.10.0
libtpu: 0.0.40
codegen_flags: <defaults>
</compile_context>

<pallas_src>
import jax
import jax.numpy as jnp
from jax.experimental import pallas as pl
from jax.experimental.pallas import tpu as pltpu

K = 3          # depthwise kernel size
PAD = K // 2   # 'same' padding


def _cdiv(a, b):
    return -(-a // b)


def _round_up(a, b):
    return _cdiv(a, b) * b


def dwsep_conv_kernel(x_ref, wdw_ref, bdw_ref, wpw_ref, bpw_ref, o_ref):
    # x_ref:   (1, Nb, Cp, TL + K - 1)  halo-padded input tile
    # wdw_ref: (Cp, K)                  depthwise filter taps
    # bdw_ref: (Cp, 1)                  depthwise bias
    # wpw_ref: (Op, Cp)                 pointwise (1x1 conv) weights
    # bpw_ref: (Op, 1)                  pointwise bias
    # o_ref:   (Nb, Op, TL)             output tile (TL is a multiple of 128)
    nb, _, tl = o_ref.shape
    cp = wdw_ref.shape[0]

    x = x_ref[0].astype(jnp.float32)            # (Nb, Cp, TL + K - 1)
    wdw = wdw_ref[...].astype(jnp.float32)      # (Cp, K)

    # Depthwise K-tap FIR via shifted multiply-accumulate on the VPU.
    # Initialize with the k=0 term (saves one zero-fill + add per tile).
    acc = wdw[None, :, 0:1] * x[:, :, 0:tl]
    for k in range(1, K):                       # K is tiny & static -> unrolled
        acc = acc + wdw[None, :, k:k + 1] * x[:, :, k:k + tl]
    acc = acc + bdw_ref[...].astype(jnp.float32)[None]
    acc = jnp.maximum(acc, 0.0)                 # ReLU

    wpw = wpw_ref[...].astype(jnp.float32)      # (Op, Cp)
    bpw = bpw_ref[...].astype(jnp.float32)      # (Op, 1)

    if cp >= 64:
        # Enough contraction depth to use the MXU: one matmul per batch
        # element in the block (nb is small and static).
        outs = [jnp.dot(wpw, acc[n], preferred_element_type=jnp.float32)
                for n in range(nb)]
        out = jnp.stack(outs, axis=0)
    else:
        # Small channel count: MXU K-dim would be a few % utilized, so do the
        # 1x1 conv as cp unrolled VPU multiply-accumulates instead.
        out = wpw[None, :, 0:1] * acc[:, 0:1, :]
        for c in range(1, cp):
            out = out + wpw[None, :, c:c + 1] * acc[:, c:c + 1, :]

    out = out + bpw[None]
    o_ref[...] = out.astype(o_ref.dtype)


def depthwise_separable_conv(x, w_dw, b_dw, w_pw, b_pw, *,
                             max_tl=512, vmem_budget_bytes=8 << 20):
    """x: (N, C, L); w_dw: (C, K); b_dw: (C, 1); w_pw: (O, C); b_pw: (O, 1).
    Returns (N, O, L), matching the PyTorch module's forward pass."""
    N, C, L = x.shape
    O = w_pw.shape[0]
    dtype = x.dtype

    # ---- TPU-friendly padded sizes -----------------------------------------
    Cp = _round_up(max(C, 8), 8)            # sublane multiple
    Op = _round_up(max(O, 8), 8)
    TL = min(max_tl, _round_up(L, 128))     # lane-dense length tile
    num_t = _cdiv(L, TL)
    Lpad = num_t * TL
    TLh = TL + 2 * PAD                      # tile + halo

    # ---- batch block: amortize grid-step overhead within a VMEM budget -----
    per_batch_bytes = (Cp * TLh + Op * TL) * 4 * 2   # in + out, double-buffered
    Nb = max(1, min(N, vmem_budget_bytes // per_batch_bytes))
    # keep >= 2 grid steps when the batch allows it (v7x has 2 TensorCores)
    if num_t * _cdiv(N, Nb) < 2 and N > 1:
        Nb = _cdiv(N, 2)
    Np = _round_up(N, Nb)

    # ---- build padded / tiled operands -------------------------------------
    # Zero padding supplies both the 'same' conv boundary zeros and the
    # channel / length / batch tails (all sliced off at the end).
    xp = jnp.zeros((Np, Cp, Lpad + 2 * PAD), dtype)
    xp = xp.at[:N, :C, PAD:PAD + L].set(x)
    # Overlapping halo tiles: (num_t, Np, Cp, TL + 2*PAD). Only 2*PAD columns
    # per tile are duplicated, so the extra HBM traffic is negligible.
    xt = jnp.stack([xp[:, :, t * TL: t * TL + TLh] for t in range(num_t)],
                   axis=0)

    wdw = jnp.zeros((Cp, K), dtype).at[:C, :].set(w_dw)
    bdw = jnp.zeros((Cp, 1), dtype).at[:C, :].set(b_dw)
    wpw = jnp.zeros((Op, Cp), dtype).at[:O, :C].set(w_pw)
    bpw = jnp.zeros((Op, 1), dtype).at[:O, :].set(b_pw)

    out = pl.pallas_call(
        dwsep_conv_kernel,
        out_shape=jax.ShapeDtypeStruct((Np, Op, Lpad), dtype),
        grid_spec=pltpu.PrefetchScalarGridSpec(
            num_scalar_prefetch=0,
            grid=(Np // Nb, num_t),
            in_specs=[
                pl.BlockSpec((1, Nb, Cp, TLh), lambda b, t: (t, b, 0, 0)),
                pl.BlockSpec((Cp, K), lambda b, t: (0, 0)),
                pl.BlockSpec((Cp, 1), lambda b, t: (0, 0)),
                pl.BlockSpec((Op, Cp), lambda b, t: (0, 0)),
                pl.BlockSpec((Op, 1), lambda b, t: (0, 0)),
            ],
            out_specs=pl.BlockSpec((Nb, Op, TL), lambda b, t: (b, 0, t)),
        ),
        compiler_params=pltpu.CompilerParams(
            dimension_semantics=("parallel", "parallel")),
    )(xt, wdw, bdw, wpw, bpw)

    return out[:N, :O, :L]


def reference(x, w_dw, b_dw, w_pw, b_pw):
    """Pure-JAX reference matching PyTorch Conv1d semantics."""
    xp = jnp.pad(x, ((0, 0), (0, 0), (PAD, PAD)))
    L = x.shape[2]
    dw = sum(w_dw[None, :, k:k + 1] * xp[:, :, k:k + L] for k in range(K))
    dw = dw + b_dw[None, :, :]
    dw = jnp.maximum(dw, 0.0)
    return jnp.einsum('oc,ncl->nol', w_pw, dw) + b_pw[None, :, :]


if __name__ == "__main__":
    # Small shapes consistent with the module: batch=2, input_dim=4,
    # length=16, output_dim=8.
    N, C, L, O = 2, 4, 16, 8
    key = jax.random.PRNGKey(0)
    kx, k1, k2, k3, k4 = jax.random.split(key, 5)

    x = jax.random.normal(kx, (N, C, L), dtype=jnp.float32)

    # Deterministic PyTorch-style uniform init.
    # depthwise weight (C,1,K)->(C,K), fan_in=K; pointwise fan_in=C.
    bound_dw = 1.0 / (K ** 0.5)
    bound_pw = 1.0 / (C ** 0.5)
    w_dw = jax.random.uniform(k1, (C, K), jnp.float32, -bound_dw, bound_dw)
    b_dw = jax.random.uniform(k2, (C, 1), jnp.float32, -bound_dw, bound_dw)
    w_pw = jax.random.uniform(k3, (O, C), jnp.float32, -bound_pw, bound_pw)
    b_pw = jax.random.uniform(k4, (O, 1), jnp.float32, -bound_pw, bound_pw)

    out = depthwise_separable_conv(x, w_dw, b_dw, w_pw, b_pw)
    out = jax.block_until_ready(out)

    ref = reference(x, w_dw, b_dw, w_pw, b_pw)
    assert out.shape == (N, O, L)
    assert jnp.allclose(out, ref, atol=1e-5, rtol=1e-5)

    print("KERNEL_OK")
</pallas_src>

<mosaic_0001>
module attributes {stable_mosaic.version = 11 : i64} {
  func.func @dwsep_conv_kernel(%arg0: i32, %arg1: i32, %arg2: memref<1x1x8x130xf32, #tpu.memory_space<vmem>>, %arg3: memref<8x3xf32, #tpu.memory_space<vmem>>, %arg4: memref<8x1xf32, #tpu.memory_space<vmem>>, %arg5: memref<8x8xf32, #tpu.memory_space<vmem>>, %arg6: memref<8x1xf32, #tpu.memory_space<vmem>>, %arg7: memref<1x8x128xf32, #tpu.memory_space<vmem>>) attributes {dimension_semantics = [#tpu.dimension_semantics<parallel>, #tpu.dimension_semantics<parallel>], iteration_bounds = array<i64: 2, 1>, scalar_prefetch = 0 : i64, scratch_operands = 0 : i64, tpu.core_type = #tpu.core_type<tc>, window_params = [{transform_indices = @transform_0, window_bounds = array<i64: 1, 1, 8, 130>}, {pipeline_mode = #tpu.pipeline_mode<synchronous>, transform_indices = @transform_1, window_bounds = array<i64: 8, 3>}, {pipeline_mode = #tpu.pipeline_mode<synchronous>, transform_indices = @transform_2, window_bounds = array<i64: 8, 1>}, {pipeline_mode = #tpu.pipeline_mode<synchronous>, transform_indices = @transform_3, window_bounds = array<i64: 8, 8>}, {pipeline_mode = #tpu.pipeline_mode<synchronous>, transform_indices = @transform_4, window_bounds = array<i64: 8, 1>}, {transform_indices = @transform_5, window_bounds = array<i64: 1, 8, 128>}]} {
    %c0 = arith.constant 0 : index
    %c0_0 = arith.constant 0 : index
    %c0_1 = arith.constant 0 : index
    %c0_2 = arith.constant 0 : index
    %0 = vector.load %arg2[%c0, %c0_0, %c0_1, %c0_2] : memref<1x1x8x130xf32, #tpu.memory_space<vmem>>, vector<1x1x8x130xf32>
    %1 = vector.shape_cast %0 : vector<1x1x8x130xf32> to vector<1x8x130xf32>
    %c0_3 = arith.constant 0 : index
    %c0_4 = arith.constant 0 : index
    %2 = vector.load %arg3[%c0_3, %c0_4] : memref<8x3xf32, #tpu.memory_space<vmem>>, vector<8x3xf32>
    %3 = vector.extract_strided_slice %2 {offsets = [0, 0], sizes = [8, 1], strides = [1, 1]} : vector<8x3xf32> to vector<8x1xf32>
    %4 = vector.shape_cast %3 : vector<8x1xf32> to vector<1x8x1xf32>
    %5 = vector.extract_strided_slice %1 {offsets = [0, 0, 0], sizes = [1, 8, 128], strides = [1, 1, 1]} : vector<1x8x130xf32> to vector<1x8x128xf32>
    %6 = vector.broadcast %4 : vector<1x8x1xf32> to vector<1x8x128xf32>
    %7 = arith.mulf %6, %5 : vector<1x8x128xf32>
    %8 = vector.extract_strided_slice %2 {offsets = [0, 1], sizes = [8, 1], strides = [1, 1]} : vector<8x3xf32> to vector<8x1xf32>
    %9 = vector.shape_cast %8 : vector<8x1xf32> to vector<1x8x1xf32>
    %10 = vector.extract_strided_slice %1 {offsets = [0, 0, 1], sizes = [1, 8, 128], strides = [1, 1, 1]} : vector<1x8x130xf32> to vector<1x8x128xf32>
    %11 = vector.broadcast %9 : vector<1x8x1xf32> to vector<1x8x128xf32>
    %12 = arith.mulf %11, %10 : vector<1x8x128xf32>
    %13 = arith.addf %7, %12 : vector<1x8x128xf32>
    %14 = vector.extract_strided_slice %2 {offsets = [0, 2], sizes = [8, 1], strides = [1, 1]} : vector<8x3xf32> to vector<8x1xf32>
    %15 = vector.shape_cast %14 : vector<8x1xf32> to vector<1x8x1xf32>
    %16 = vector.extract_strided_slice %1 {offsets = [0, 0, 2], sizes = [1, 8, 128], strides = [1, 1, 1]} : vector<1x8x130xf32> to vector<1x8x128xf32>
    %17 = vector.broadcast %15 : vector<1x8x1xf32> to vector<1x8x128xf32>
    %18 = arith.mulf %17, %16 : vector<1x8x128xf32>
    %19 = arith.addf %13, %18 : vector<1x8x128xf32>
    %c0_5 = arith.constant 0 : index
    %c0_6 = arith.constant 0 : index
    %20 = vector.load %arg4[%c0_5, %c0_6] : memref<8x1xf32, #tpu.memory_space<vmem>>, vector<8x1xf32>
    %21 = vector.shape_cast %20 : vector<8x1xf32> to vector<1x8x1xf32>
    %22 = vector.broadcast %21 : vector<1x8x1xf32> to vector<1x8x128xf32>
    %23 = arith.addf %19, %22 : vector<1x8x128xf32>
    %cst = arith.constant 0.000000e+00 : f32
    %24 = vector.broadcast %cst : f32 to vector<1x8x128xf32>
    %25 = arith.maximumf %23, %24 : vector<1x8x128xf32>
    %c0_7 = arith.constant 0 : index
    %c0_8 = arith.constant 0 : index
    %26 = vector.load %arg5[%c0_7, %c0_8] : memref<8x8xf32, #tpu.memory_space<vmem>>, vector<8x8xf32>
    %c0_9 = arith.constant 0 : index
    %c0_10 = arith.constant 0 : index
    %27 = vector.load %arg6[%c0_9, %c0_10] : memref<8x1xf32, #tpu.memory_space<vmem>>, vector<8x1xf32>
    %28 = vector.extract_strided_slice %26 {offsets = [0, 0], sizes = [8, 1], strides = [1, 1]} : vector<8x8xf32> to vector<8x1xf32>
    %29 = vector.shape_cast %28 : vector<8x1xf32> to vector<1x8x1xf32>
    %30 = vector.extract_strided_slice %25 {offsets = [0, 0, 0], sizes = [1, 1, 128], strides = [1, 1, 1]} : vector<1x8x128xf32> to vector<1x1x128xf32>
    %31 = vector.broadcast %29 : vector<1x8x1xf32> to vector<1x8x128xf32>
    %32 = vector.broadcast %30 : vector<1x1x128xf32> to vector<1x8x128xf32>
    %33 = arith.mulf %31, %32 : vector<1x8x128xf32>
    %34 = vector.extract_strided_slice %26 {offsets = [0, 1], sizes = [8, 1], strides = [1, 1]} : vector<8x8xf32> to vector<8x1xf32>
    %35 = vector.shape_cast %34 : vector<8x1xf32> to vector<1x8x1xf32>
    %36 = vector.extract_strided_slice %25 {offsets = [0, 1, 0], sizes = [1, 1, 128], strides = [1, 1, 1]} : vector<1x8x128xf32> to vector<1x1x128xf32>
    %37 = vector.broadcast %35 : vector<1x8x1xf32> to vector<1x8x128xf32>
    %38 = vector.broadcast %36 : vector<1x1x128xf32> to vector<1x8x128xf32>
    %39 = arith.mulf %37, %38 : vector<1x8x128xf32>
    %40 = arith.addf %33, %39 : vector<1x8x128xf32>
    %41 = vector.extract_strided_slice %26 {offsets = [0, 2], sizes = [8, 1], strides = [1, 1]} : vector<8x8xf32> to vector<8x1xf32>
    %42 = vector.shape_cast %41 : vector<8x1xf32> to vector<1x8x1xf32>
    %43 = vector.extract_strided_slice %25 {offsets = [0, 2, 0], sizes = [1, 1, 128], strides = [1, 1, 1]} : vector<1x8x128xf32> to vector<1x1x128xf32>
    %44 = vector.broadcast %42 : vector<1x8x1xf32> to vector<1x8x128xf32>
    %45 = vector.broadcast %43 : vector<1x1x128xf32> to vector<1x8x128xf32>
    %46 = arith.mulf %44, %45 : vector<1x8x128xf32>
    %47 = arith.addf %40, %46 : vector<1x8x128xf32>
    %48 = vector.extract_strided_slice %26 {offsets = [0, 3], sizes = [8, 1], strides = [1, 1]} : vector<8x8xf32> to vector<8x1xf32>
    %49 = vector.shape_cast %48 : vector<8x1xf32> to vector<1x8x1xf32>
    %50 = vector.extract_strided_slice %25 {offsets = [0, 3, 0], sizes = [1, 1, 128], strides = [1, 1, 1]} : vector<1x8x128xf32> to vector<1x1x128xf32>
    %51 = vector.broadcast %49 : vector<1x8x1xf32> to vector<1x8x128xf32>
    %52 = vector.broadcast %50 : vector<1x1x128xf32> to vector<1x8x128xf32>
    %53 = arith.mulf %51, %52 : vector<1x8x128xf32>
    %54 = arith.addf %47, %53 : vector<1x8x128xf32>
    %55 = vector.extract_strided_slice %26 {offsets = [0, 4], sizes = [8, 1], strides = [1, 1]} : vector<8x8xf32> to vector<8x1xf32>
    %56 = vector.shape_cast %55 : vector<8x1xf32> to vector<1x8x1xf32>
    %57 = vector.extract_strided_slice %25 {offsets = [0, 4, 0], sizes = [1, 1, 128], strides = [1, 1, 1]} : vector<1x8x128xf32> to vector<1x1x128xf32>
    %58 = vector.broadcast %56 : vector<1x8x1xf32> to vector<1x8x128xf32>
    %59 = vector.broadcast %57 : vector<1x1x128xf32> to vector<1x8x128xf32>
    %60 = arith.mulf %58, %59 : vector<1x8x128xf32>
    %61 = arith.addf %54, %60 : vector<1x8x128xf32>
    %62 = vector.extract_strided_slice %26 {offsets = [0, 5], sizes = [8, 1], strides = [1, 1]} : vector<8x8xf32> to vector<8x1xf32>
    %63 = vector.shape_cast %62 : vector<8x1xf32> to vector<1x8x1xf32>
    %64 = vector.extract_strided_slice %25 {offsets = [0, 5, 0], sizes = [1, 1, 128], strides = [1, 1, 1]} : vector<1x8x128xf32> to vector<1x1x128xf32>
    %65 = vector.broadcast %63 : vector<1x8x1xf32> to vector<1x8x128xf32>
    %66 = vector.broadcast %64 : vector<1x1x128xf32> to vector<1x8x128xf32>
    %67 = arith.mulf %65, %66 : vector<1x8x128xf32>
    %68 = arith.addf %61, %67 : vector<1x8x128xf32>
    %69 = vector.extract_strided_slice %26 {offsets = [0, 6], sizes = [8, 1], strides = [1, 1]} : vector<8x8xf32> to vector<8x1xf32>
    %70 = vector.shape_cast %69 : vector<8x1xf32> to vector<1x8x1xf32>
    %71 = vector.extract_strided_slice %25 {offsets = [0, 6, 0], sizes = [1, 1, 128], strides = [1, 1, 1]} : vector<1x8x128xf32> to vector<1x1x128xf32>
    %72 = vector.broadcast %70 : vector<1x8x1xf32> to vector<1x8x128xf32>
    %73 = vector.broadcast %71 : vector<1x1x128xf32> to vector<1x8x128xf32>
    %74 = arith.mulf %72, %73 : vector<1x8x128xf32>
    %75 = arith.addf %68, %74 : vector<1x8x128xf32>
    %76 = vector.extract_strided_slice %26 {offsets = [0, 7], sizes = [8, 1], strides = [1, 1]} : vector<8x8xf32> to vector<8x1xf32>
    %77 = vector.shape_cast %76 : vector<8x1xf32> to vector<1x8x1xf32>
    %78 = vector.extract_strided_slice %25 {offsets = [0, 7, 0], sizes = [1, 1, 128], strides = [1, 1, 1]} : vector<1x8x128xf32> to vector<1x1x128xf32>
    %79 = vector.broadcast %77 : vector<1x8x1xf32> to vector<1x8x128xf32>
    %80 = vector.broadcast %78 : vector<1x1x128xf32> to vector<1x8x128xf32>
    %81 = arith.mulf %79, %80 : vector<1x8x128xf32>
    %82 = arith.addf %75, %81 : vector<1x8x128xf32>
    %83 = vector.shape_cast %27 : vector<8x1xf32> to vector<1x8x1xf32>
    %84 = vector.broadcast %83 : vector<1x8x1xf32> to vector<1x8x128xf32>
    %85 = arith.addf %82, %84 : vector<1x8x128xf32>
    %c0_11 = arith.constant 0 : index
    %c0_12 = arith.constant 0 : index
    %c0_13 = arith.constant 0 : index
    %86 = vector.load %arg7[%c0_11, %c0_12, %c0_13] : memref<1x8x128xf32, #tpu.memory_space<vmem>>, vector<1x8x128xf32>
    tpu.vector_store %arg7[%c0_11, %c0_12, %c0_13], %85 {strides = array<i32>} : memref<1x8x128xf32, #tpu.memory_space<vmem>>, vector<1x8x128xf32>,
    return
  }
  func.func @transform_0(%arg0: i32, %arg1: i32) -> (i32, i32, i32, i32) {
    %c0_i32 = arith.constant 0 : i32
    %c0_i32_0 = arith.constant 0 : i32
    %c0_i32_1 = arith.constant 0 : i32
    return %arg1, %arg0, %c0_i32, %c0_i32_0 : i32, i32, i32, i32
  }
  func.func @transform_1(%arg0: i32, %arg1: i32) -> (i32, i32) {
    %c0_i32 = arith.constant 0 : i32
    %c0_i32_0 = arith.constant 0 : i32
    %c0_i32_1 = arith.constant 0 : i32
    return %c0_i32, %c0_i32_0 : i32, i32
  }
  func.func @transform_2(%arg0: i32, %arg1: i32) -> (i32, i32) {
    %c0_i32 = arith.constant 0 : i32
    %c0_i32_0 = arith.constant 0 : i32
    %c0_i32_1 = arith.constant 0 : i32
    return %c0_i32, %c0_i32_0 : i32, i32
  }
  func.func @transform_3(%arg0: i32, %arg1: i32) -> (i32, i32) {
    %c0_i32 = arith.constant 0 : i32
    %c0_i32_0 = arith.constant 0 : i32
    %c0_i32_1 = arith.constant 0 : i32
    return %c0_i32, %c0_i32_0 : i32, i32
  }
  func.func @transform_4(%arg0: i32, %arg1: i32) -> (i32, i32) {
    %c0_i32 = arith.constant 0 : i32
    %c0_i32_0 = arith.constant 0 : i32
    %c0_i32_1 = arith.constant 0 : i32
    return %c0_i32, %c0_i32_0 : i32, i32
  }
  func.func @transform_5(%arg0: i32, %arg1: i32) -> (i32, i32, i32) {
    %c0_i32 = arith.constant 0 : i32
    %c0_i32_0 = arith.constant 0 : i32
    return %arg0, %c0_i32, %arg1 : i32, i32, i32
  }
}

</mosaic_0001>

<llo_original>
// kernel: tpu_custom_call.1
$region0: #{tpu_custom_call.1}
  #allocation0 [shape = 'u32[]', space=smem, size = 0x4, offset = 0x4, fixed_abs, tag = 'smem constant byte address 0x4 - core index']
  #allocation1 [shape = 'u32[144,128]{1,0:T(1,128)}', space=vmem, size = 0x12000, scoped, tag = 'internal scratch']
  %s0 = inlined_call_operand.hbm [shape: f32[1,2,8,130], index: 0, kind: input, shape index: {}]
  %s1 = inlined_call_operand.vmem [shape: f32[8,3], index: 1, kind: input, shape index: {}]
  %s2 = inlined_call_operand.vmem [shape: f32[8,1], index: 2, kind: input, shape index: {}]
  %s3 = inlined_call_operand.vmem [shape: f32[8,8], index: 3, kind: input, shape index: {}]
  %s4 = inlined_call_operand.vmem [shape: f32[8,1], index: 4, kind: input, shape index: {}]
  %s5 = inlined_call_operand.hbm [shape: f32[2,8,128], index: 5, kind: output, shape index: {}]
  %s6 = sld [smem:[#allocation0]]
  $region57: #{tpu_custom_call.1} parent=0
    _
  %s8 = ssub.s32 1, %s6
  %s9 = scalar_select 0, %s8, %s6
  $region1: #{tpu_custom_call.1} parent=0
    #allocation2 [shape = 'u8[16384]{0}', space=vmem, size = 0x4000, scoped, tag = 'input window, operand 0']
    #allocation3 [shape = 's32[2]{0}', space=sflag, size = 0x8, scoped, tag = 'scoped memory for tpu_custom_call.1']
    #allocation4 [shape = 's32[2]{0}', space=sflag, size = 0x8, scoped, tag = 'scoped memory for tpu_custom_call.1']
    #allocation5 [shape = 'u8[8192]{0}', space=vmem, size = 0x2000, scoped, tag = 'output window, operand 0']
    %10 = vsyncpa [#allocation3], 0
    %s11 = scalar_lea.sflag [#allocation3], 1
    %12 = vsyncpa %s11, 0
    %13 = vsyncpa [#allocation4], 0
    %s14 = scalar_lea.sflag [#allocation4], 1
    %15 = vsyncpa %s14, 0
    loop: start=0, step=1, limit=4
    $region2: #{tpu_custom_call.1} parent=1 // loop_pre_header
      _
    $region3: #{tpu_custom_call.1} parent=1 // loop_header
      %s17 = sphi 0, %s21
      %p18 = scmp.ge.s32.totalorder %s17, 4
      %s24 = sphi 0, %s36
      %s25 = sphi 0, %s32
      %s26 = sphi 0, %s24
      %s27 = sphi 0, %s25
      %s28 = sphi 0, %s26
      %s29 = sphi 0, %s27
      %s41 = sphi 0, %s43
      %s44 = sphi 0, %s41
      %s45 = sphi 0, %s44
      %s61 = sphi 0, %s45
      %s65 = sphi 0, %s65
      %s67 = sphi 0, %s65
      %s68 = sphi 0, %s67
      %s82 = sphi 0, %s68
      %s86 = sphi 0, %s86
      %s88 = sphi 0, %s86
      %s89 = sphi 0, %s88
      %s103 = sphi 0, %s89
      %s107 = sphi 0, %s107
      %s109 = sphi 0, %s107
      %s110 = sphi 0, %s109
      %s124 = sphi 0, %s110
      %s128 = sphi 0, %s128
      %s130 = sphi 0, %s128
      %s131 = sphi 0, %s130
      %s145 = sphi 0, %s131
      %s153 = sphi 0, %s155
      %s156 = sphi 0, %s153
      %s157 = sphi 0, %s156
      %s173 = sphi 0, %s157
    $region4: #{tpu_custom_call.1} parent=1 // loop_header_branch
      %20 = sbr.rel (%p18) target = $region8
    $region5: #{tpu_custom_call.1} parent=1 // loop_body
      %s22 = ssub.s32 %s17, 1
      %s23 = ssub.s32 %s17, 2
      %s30 = sadd.s32 1, %s25
      %p31 = scmp.ge.s32.totalorder %s30, 1
      %s32 = scalar_select %p31, 0, %s30
      %s33 = sadd.s32 1, %s24
      %s34 = scalar_select %p31, %s33, %s24
      %p35 = scmp.ge.s32.totalorder %s34, 2
      %s36 = scalar_select %p35, 0, %s34
      %s37 = ssub.s32 %s25, %s32
      %s38 = ssub.s32 %s24, %s36
      %s39 = sor.u32 %s37, %s38
      %p40 = scmp.eq.s32.totalorder %s39, 0
      %s42 = sadd.s32 %s41, 1
      %s43 = scalar_select %p40, %s41, %s42
      %p46 = pneg %p40
      %p47 = scmp.eq.s32.totalorder %s17, 1
      %p48 = por %p46, %p47
      %p49 = scmp.ne.s32.totalorder %s41, %s44
      %p50 = scmp.eq.s32.totalorder %s17, 0
      %p51 = por %p49, %p50
      %p52 = scmp.ne.s32.totalorder %s41, %s44
      %p53 = scmp.eq.s32.totalorder %s22, 1
      %p54 = por %p52, %p53
      %p55 = scmp.ne.s32.totalorder %s44, %s45
      %p56 = scmp.eq.s32.totalorder %s22, 0
      %p57 = por %p55, %p56
      %p58 = scmp.ne.s32.totalorder %s44, %s45
      %p59 = scmp.eq.s32.totalorder %s23, 1
      %p60 = por %p58, %p59
      %p62 = scmp.ne.s32.totalorder %s45, %s61
      %p63 = scmp.eq.s32.totalorder %s23, 0
      %p64 = por %p62, %p63
      %s66 = sadd.s32 %s65, 1
      %p69 = scmp.eq.s32.totalorder %s17, 1
      %p70 = scmp.ne.s32.totalorder %s65, %s67
      %p71 = scmp.eq.s32.totalorder %s17, 0
      %p72 = por %p70, %p71
      %p73 = scmp.ne.s32.totalorder %s65, %s67
      %p74 = scmp.eq.s32.totalorder %s22, 1
      %p75 = por %p73, %p74
      %p76 = scmp.ne.s32.totalorder %s67, %s68
      %p77 = scmp.eq.s32.totalorder %s22, 0
      %p78 = por %p76, %p77
      %p79 = scmp.ne.s32.totalorder %s67, %s68
      %p80 = scmp.eq.s32.totalorder %s23, 1
      %p81 = por %p79, %p80
      %p83 = scmp.ne.s32.totalorder %s68, %s82
      %p84 = scmp.eq.s32.totalorder %s23, 0
      %p85 = por %p83, %p84
      %s87 = sadd.s32 %s86, 1
      %p90 = scmp.eq.s32.totalorder %s17, 1
      %p91 = scmp.ne.s32.totalorder %s86, %s88
      %p92 = scmp.eq.s32.totalorder %s17, 0
      %p93 = por %p91, %p92
      %p94 = scmp.ne.s32.totalorder %s86, %s88
      %p95 = scmp.eq.s32.totalorder %s22, 1
      %p96 = por %p94, %p95
      %p97 = scmp.ne.s32.totalorder %s88, %s89
      %p98 = scmp.eq.s32.totalorder %s22, 0
      %p99 = por %p97, %p98
      %p100 = scmp.ne.s32.totalorder %s88, %s89
      %p101 = scmp.eq.s32.totalorder %s23, 1
      %p102 = por %p100, %p101
      %p104 = scmp.ne.s32.totalorder %s89, %s103
      %p105 = scmp.eq.s32.totalorder %s23, 0
      %p106 = por %p104, %p105
      %s108 = sadd.s32 %s107, 1
      %p111 = scmp.eq.s32.totalorder %s17, 1
      %p112 = scmp.ne.s32.totalorder %s107, %s109
      %p113 = scmp.eq.s32.totalorder %s17, 0
      %p114 = por %p112, %p113
      %p115 = scmp.ne.s32.totalorder %s107, %s109
      %p116 = scmp.eq.s32.totalorder %s22, 1
      %p117 = por %p115, %p116
      %p118 = scmp.ne.s32.totalorder %s109, %s110
      %p119 = scmp.eq.s32.totalorder %s22, 0
      %p120 = por %p118, %p119
      %p121 = scmp.ne.s32.totalorder %s109, %s110
      %p122 = scmp.eq.s32.totalorder %s23, 1
      %p123 = por %p121, %p122
      %p125 = scmp.ne.s32.totalorder %s110, %s124
      %p126 = scmp.eq.s32.totalorder %s23, 0
      %p127 = por %p125, %p126
      %s129 = sadd.s32 %s128, 1
      %p132 = scmp.eq.s32.totalorder %s17, 1
      %p133 = scmp.ne.s32.totalorder %s128, %s130
      %p134 = scmp.eq.s32.totalorder %s17, 0
      %p135 = por %p133, %p134
      %p136 = scmp.ne.s32.totalorder %s128, %s130
      %p137 = scmp.eq.s32.totalorder %s22, 1
      %p138 = por %p136, %p137
      %p139 = scmp.ne.s32.totalorder %s130, %s131
      %p140 = scmp.eq.s32.totalorder %s22, 0
      %p141 = por %p139, %p140
      %p142 = scmp.ne.s32.totalorder %s130, %s131
      %p143 = scmp.eq.s32.totalorder %s23, 1
      %p144 = por %p142, %p143
      %p146 = scmp.ne.s32.totalorder %s131, %s145
      %p147 = scmp.eq.s32.totalorder %s23, 0
      %p148 = por %p146, %p147
      %s149 = ssub.s32 %s24, %s36
      %s150 = ssub.s32 %s25, %s32
      %s151 = sor.u32 %s149, %s150
      %p152 = scmp.eq.s32.totalorder %s151, 0
      %s154 = sadd.s32 %s153, 1
      %s155 = scalar_select %p152, %s153, %s154
      %p158 = pneg %p152
      %p159 = scmp.eq.s32.totalorder %s17, 1
      %p160 = por %p158, %p159
      %p161 = scmp.ne.s32.totalorder %s153, %s156
      %p162 = scmp.eq.s32.totalorder %s17, 0
      %p163 = por %p161, %p162
      %p164 = scmp.ne.s32.totalorder %s153, %s156
      %p165 = scmp.eq.s32.totalorder %s22, 1
      %p166 = por %p164, %p165
      %p167 = scmp.ne.s32.totalorder %s156, %s157
      %p168 = scmp.eq.s32.totalorder %s22, 0
      %p169 = por %p167, %p168
      %p170 = scmp.ne.s32.totalorder %s156, %s157
      %p171 = scmp.eq.s32.totalorder %s23, 1
      %p172 = por %p170, %p171
      %p174 = scmp.ne.s32.totalorder %s157, %s173
      %p175 = scmp.eq.s32.totalorder %s23, 0
      %p176 = por %p174, %p175
      %p177 = scmp.le.s32.totalorder 1, %s17
      %p178 = scmp.lt.s32.totalorder %s17, 3
      %p179 = pnand %p177, %p178
      %p180 = pneg %p179
      // Predicated region
      $region9: #{tpu_custom_call.1} parent=5 // pred_check
        _
      $region10: #{tpu_custom_call.1} parent=5 // pred_check_branch
        %182 = sbr.rel (%p179) target = $region12
      $region11: #{tpu_custom_call.1} parent=5 // pred_region
        %s183 = ssub.s32 %s17, 1
        // Predicated region
        $region13: #{tpu_custom_call.1} parent=11 // pred_check
          %p184 = pneg %p78
        $region14: #{tpu_custom_call.1} parent=11 // pred_check_branch
          %186 = sbr.rel (%p184) target = $region16
        $region15: #{tpu_custom_call.1} parent=11 // pred_region
          _
        $region16: #{tpu_custom_call.1} parent=11 // pred_fallthru
          _
        // Predicated region
        $region17: #{tpu_custom_call.1} parent=11 // pred_check
          %p187 = pneg %p99
        $region18: #{tpu_custom_call.1} parent=11 // pred_check_branch
          %189 = sbr.rel (%p187) target = $region20
        $region19: #{tpu_custom_call.1} parent=11 // pred_region
          _
        $region20: #{tpu_custom_call.1} parent=11 // pred_fallthru
          _
        // Predicated region
        $region21: #{tpu_custom_call.1} parent=11 // pred_check
          %p190 = pneg %p120
        $region22: #{tpu_custom_call.1} parent=11 // pred_check_branch
          %192 = sbr.rel (%p190) target = $region24
        $region23: #{tpu_custom_call.1} parent=11 // pred_region
          _
        $region24: #{tpu_custom_call.1} parent=11 // pred_fallthru
          _
        // Predicated region
        $region25: #{tpu_custom_call.1} parent=11 // pred_check
          %p193 = pneg %p141
        $region26: #{tpu_custom_call.1} parent=11 // pred_check_branch
          %195 = sbr.rel (%p193) target = $region28
        $region27: #{tpu_custom_call.1} parent=11 // pred_region
          _
        $region28: #{tpu_custom_call.1} parent=11 // pred_fallthru
          _
      $region12: #{tpu_custom_call.1} parent=5 // pred_fallthru
        _
      %p196 = scmp.lt.s32.totalorder %s17, 2
      // Predicated region
      $region29: #{tpu_custom_call.1} parent=5 // pred_check
        %p197 = pneg %p196
      $region30: #{tpu_custom_call.1} parent=5 // pred_check_branch
        %199 = sbr.rel (%p197) target = $region32
      $region31: #{tpu_custom_call.1} parent=5 // pred_region
        // Predicated region
        $region33: #{tpu_custom_call.1} parent=31 // pred_check
          %p200 = pneg %p51
        $region34: #{tpu_custom_call.1} parent=31 // pred_check_branch
          %202 = sbr.rel (%p200) target = $region36
        $region35: #{tpu_custom_call.1} parent=31 // pred_region
          %s203 = sand.u32 %s41, 1
          %s204 = scalar_lea.sflag [#allocation3], %s203
          %s205 = sand.u32 %s41, 1
          %s206 = smul.addr %s205, 16
          %s207 = scalar_lea.vmem [#allocation2], %s206
          %s209 = ssub.s32 256, 256
          %210 = vsyncadd %s204, %s209
          %s211 = smul.addr %s24, 2
          %s212 = smul.addr %s25, 4
          %s213 = sadd.s32 %s211, %s212
          %s214 = smul.addr %s213, 128
          %s215 = scalar_lea.hbm %s0, %s214
          %s217 = sshll.u32 %s207, 4
          %s218 = int_to_ptr.vmem [resolvable:$true] %s217
          %220 = dma.hbm_to_vmem [thread:$0]  %s215, 256, %s218, %s204
        $region36: #{tpu_custom_call.1} parent=31 // pred_fallthru
          _
      $region32: #{tpu_custom_call.1} parent=5 // pred_fallthru
        _
      %p221 = scmp.le.s32.totalorder 1, %s17
      %p222 = scmp.lt.s32.totalorder %s17, 3
      %p223 = pnand %p221, %p222
      %p224 = pneg %p223
      // Predicated region
      $region37: #{tpu_custom_call.1} parent=5 // pred_check
        _
      $region38: #{tpu_custom_call.1} parent=5 // pred_check_branch
        %226 = sbr.rel (%p223) target = $region40
      $region39: #{tpu_custom_call.1} parent=5 // pred_region
        %s227 = ssub.s32 %s17, 1
        %s228 = sand.u32 %s44, 1
        %s229 = scalar_lea.sflag [#allocation3], %s228
        %s230 = sand.u32 %s44, 1
        %s231 = smul.addr %s230, 16
        %s232 = scalar_lea.vmem [#allocation2], %s231
        // Predicated region
        $region41: #{tpu_custom_call.1} parent=39 // pred_check
          %p233 = pneg %p57
        $region42: #{tpu_custom_call.1} parent=39 // pred_check_branch
          %235 = sbr.rel (%p233) target = $region44
        $region43: #{tpu_custom_call.1} parent=39 // pred_region
          %236 = dma.done %s229, 256
        $region44: #{tpu_custom_call.1} parent=39 // pred_fallthru
          _
        %s237 = sand.u32 %s44, 1
        %s238 = scalar_lea.sflag [#allocation3], %s237
        %s239 = sand.u32 %s44, 1
        %s240 = smul.addr %s239, 16
        %s241 = scalar_lea.vmem [#allocation2], %s240
        %p242 = pneg %p57
        %p243 = pneg %p54
        %p244 = pneg %p78
        %p245 = pneg %p75
        %p246 = pneg %p99
        %p247 = pneg %p96
        %p248 = pneg %p120
        %p249 = pneg %p117
        %p250 = pneg %p141
        %p251 = pneg %p138
        %p252 = pneg %p169
        %p253 = pneg %p166
        %s254 = sand.u32 %s156, 1
        %s255 = scalar_lea.sflag [#allocation4], %s254
        %s256 = sand.u32 %s156, 1
        %s257 = smul.addr %s256, 8
        %s258 = scalar_lea.vmem [#allocation5], %s257
        %v259 = vld [vmem:[%s232] sm:$0xff]
        %v260 = vld [vmem:[%s232 + $0x8] sm:$0xff]
        %v261 = vld [vmem:[%s1] sm:$0xff]
        %263 = vset.pattern.permute.xlu0 0
        %264 = vperm.xlu0 %263, %v261
        %v265 = vpop.permute.xlu0 %264
        %v267 = vmul.f32 %v265, %v259
        %268 = vset.pattern.permute.xlu0 1
        %269 = vperm.xlu0 %268, %v261
        %v270 = vpop.permute.xlu0 %269
        %v272 = vmul.f32 %v270, %v259
        %v273 = vmul.f32 %v270, %v260
        %276 = vrot.lane.b32.xlu0 %v272, 127
        %v277 = vpop.permute.xlu0 %276
        %278 = vrot.lane.b32.xlu0 %v273, 127
        %v279 = vpop.permute.xlu0 %278
        %vm280 = vcmask 1039360
        %v281 = vsel %vm280, %v277, %v279
        %v283 = vadd.f32 %v267, %v281
        %284 = vset.pattern.permute.xlu0 2
        %285 = vperm.xlu0 %284, %v261
        %v286 = vpop.permute.xlu0 %285
        %v288 = vmul.f32 %v286, %v259
        %v289 = vmul.f32 %v286, %v260
        %292 = vrot.lane.b32.xlu0 %v288, 126
        %v293 = vpop.permute.xlu0 %292
        %294 = vrot.lane.b32.xlu0 %v289, 126
        %v295 = vpop.permute.xlu0 %294
        %vm296 = vcmask 1031168
        %v297 = vsel %vm296, %v293, %v295
        %v299 = vadd.f32 %v283, %v297
        %v300 = vld [vmem:[%s2] sm:$0xff]
        %302 = vset.pattern.permute.xlu0 0
        %303 = vperm.xlu0 %302, %v300
        %v304 = vpop.permute.xlu0 %303
        %v306 = vadd.f32 %v299, %v304
        %v307 = vmax.f32 %v306, 0.0
        %v308 = vld [vmem:[%s3] sm:$0xff]
        %v309 = vld [vmem:[%s4] sm:$0xff]
        %311 = vset.pattern.permute.xlu0 0
        %312 = vperm.xlu0 %311, %v308
        %v313 = vpop.permute.xlu0 %312
        %v315 = vlaneseq
        %v316 = vshrl.u32 %v315, 7
        %v317 = vsub.s32 0, %v316
        %v318 = vrot.slane %v307, %v317
        %v319 = vmul.f32 %v313, %v318
        %320 = vset.pattern.permute.xlu0 1
        %321 = vperm.xlu0 %320, %v308
        %v322 = vpop.permute.xlu0 %321
        %v324 = vlaneseq
        %v325 = vshrl.u32 %v324, 7
        %v326 = vsub.s32 1, %v325
        %v327 = vrot.slane %v307, %v326
        %v328 = vmul.f32 %v322, %v327
        %v329 = vadd.f32 %v319, %v328
        %330 = vset.pattern.permute.xlu0 2
        %331 = vperm.xlu0 %330, %v308
        %v332 = vpop.permute.xlu0 %331
        %v334 = vlaneseq
        %v335 = vshrl.u32 %v334, 7
        %v336 = vsub.s32 2, %v335
        %v337 = vrot.slane %v307, %v336
        %v338 = vmul.f32 %v332, %v337
        %v339 = vadd.f32 %v329, %v338
        %340 = vset.pattern.permute.xlu0 3
        %341 = vperm.xlu0 %340, %v308
        %v342 = vpop.permute.xlu0 %341
        %v344 = vlaneseq
        %v345 = vshrl.u32 %v344, 7
        %v346 = vsub.s32 3, %v345
        %v347 = vrot.slane %v307, %v346
        %v348 = vmul.f32 %v342, %v347
        %v349 = vadd.f32 %v339, %v348
        %350 = vset.pattern.permute.xlu0 4
        %351 = vperm.xlu0 %350, %v308
        %v352 = vpop.permute.xlu0 %351
        %v354 = vlaneseq
        %v355 = vshrl.u32 %v354, 7
        %v356 = vsub.s32 4, %v355
        %v357 = vrot.slane %v307, %v356
        %v358 = vmul.f32 %v352, %v357
        %v359 = vadd.f32 %v349, %v358
        %360 = vset.pattern.permute.xlu0 5
        %361 = vperm.xlu0 %360, %v308
        %v362 = vpop.permute.xlu0 %361
        %v364 = vlaneseq
        %v365 = vshrl.u32 %v364, 7
        %v366 = vsub.s32 5, %v365
        %v367 = vrot.slane %v307, %v366
        %v368 = vmul.f32 %v362, %v367
        %v369 = vadd.f32 %v359, %v368
        %370 = vset.pattern.permute.xlu0 6
        %371 = vperm.xlu0 %370, %v308
        %v372 = vpop.permute.xlu0 %371
        %v374 = vlaneseq
        %v375 = vshrl.u32 %v374, 7
        %v376 = vsub.s32 6, %v375
        %v377 = vrot.slane %v307, %v376
        %v378 = vmul.f32 %v372, %v377
        %v379 = vadd.f32 %v369, %v378
        %380 = vset.pattern.permute.xlu0 7
        %381 = vperm.xlu0 %380, %v308
        %v382 = vpop.permute.xlu0 %381
        %v384 = vlaneseq
        %v385 = vshrl.u32 %v384, 7
        %v386 = vsub.s32 7, %v385
        %v387 = vrot.slane %v307, %v386
        %v388 = vmul.f32 %v382, %v387
        %v389 = vadd.f32 %v379, %v388
        %391 = vset.pattern.permute.xlu0 0
        %392 = vperm.xlu0 %391, %v309
        %v393 = vpop.permute.xlu0 %392
        %v395 = vadd.f32 %v389, %v393
        %396 = vst [vmem:[%s258] sm:$0xff] %v395
        %s397 = sand.u32 %s156, 1
        %s398 = scalar_lea.sflag [#allocation4], %s397
        %s399 = sand.u32 %s156, 1
        %s400 = smul.addr %s399, 8
        %s401 = scalar_lea.vmem [#allocation5], %s400
        // Predicated region
        $region45: #{tpu_custom_call.1} parent=39 // pred_check
          %p402 = pneg %p166
        $region46: #{tpu_custom_call.1} parent=39 // pred_check_branch
          %404 = sbr.rel (%p402) target = $region48
        $region47: #{tpu_custom_call.1} parent=39 // pred_region
          %s406 = ssub.s32 128, 128
          %407 = vsyncadd %s398, %s406
          %s408 = sadd.s32 %s27, %s26
          %s409 = smul.addr %s408, 128
          %s410 = scalar_lea.hbm %s5, %s409
          %s412 = sshll.u32 %s401, 4
          %s413 = int_to_ptr.vmem [resolvable:$true] %s412
          %415 = dma.vmem_to_hbm [thread:$0]  %s413, 128, %s410, %s398
        $region48: #{tpu_custom_call.1} parent=39 // pred_fallthru
          _
      $region40: #{tpu_custom_call.1} parent=5 // pred_fallthru
        _
      %p416 = scmp.le.s32.totalorder 2, %s17
      // Predicated region
      $region49: #{tpu_custom_call.1} parent=5 // pred_check
        %p417 = pneg %p416
      $region50: #{tpu_custom_call.1} parent=5 // pred_check_branch
        %419 = sbr.rel (%p417) target = $region52
      $region51: #{tpu_custom_call.1} parent=5 // pred_region
        %s420 = ssub.s32 %s17, 2
        // Predicated region
        $region53: #{tpu_custom_call.1} parent=51 // pred_check
          %p421 = pneg %p172
        $region54: #{tpu_custom_call.1} parent=51 // pred_check_branch
          %423 = sbr.rel (%p421) target = $region56
        $region55: #{tpu_custom_call.1} parent=51 // pred_region
          %s424 = sand.u32 %s157, 1
          %s425 = scalar_lea.sflag [#allocation4], %s424
          %s426 = sand.u32 %s157, 1
          %s427 = smul.addr %s426, 8
          %s428 = scalar_lea.vmem [#allocation5], %s427
          %429 = dma.done %s425, 128
        $region56: #{tpu_custom_call.1} parent=51 // pred_fallthru
          _
      $region52: #{tpu_custom_call.1} parent=5 // pred_fallthru
        _
    $region6: #{tpu_custom_call.1} parent=1 // loop_footer
      %s21 = sadd.s32 1, %s17
    $region7: #{tpu_custom_call.1} parent=1 // loop_footer_branch
      %16 = sbr.rel target = $region3
    $region8: #{tpu_custom_call.1} parent=1 // loop_exit
      _
    %430 = vsyncpa [#allocation3], 1
    %s431 = scalar_lea.sflag [#allocation3], 1
    %432 = vsyncpa %s431, 1
    %433 = vsyncpa [#allocation4], 1
    %s434 = scalar_lea.sflag [#allocation4], 1
    %435 = vsyncpa %s434, 1

</llo_original>
